<compile_context>
chip_gen: v7x
topology: tpu7x:2x2x1
jax: 0.10.0
libtpu: 0.0.40
codegen_flags: <defaults>
</compile_context>

<pallas_src>
import numpy as np
import jax
import jax.numpy as jnp
from jax.experimental import pallas as pl
from jax.experimental.pallas import tpu as pltpu


def beta_schedule(linear_start=0.00085, linear_end=0.012, n_timestep=1000):
    betas = np.linspace(linear_start ** 0.5, linear_end ** 0.5, n_timestep,
                        dtype=np.float64) ** 2
    return betas


# ---------------------------------------------------------------------------
# Trace-time tiling helpers
# ---------------------------------------------------------------------------
_LANE_BLOCK_CAP = 8192      # max lanes per BlockSpec block (keeps grid pipelined)
_VREG_ELEM_CAP = 8192       # rows * inner_chunk elements (bounds vreg working set)


def _input_budget_bytes():
    """Double-buffered x+noise VMEM budget, derived from the chip when queryable."""
    try:
        cap = pltpu.get_tpu_info().vmem_capacity_bytes
    except Exception:
        cap = 64 << 20                      # conservative (v7x per-core physical VMEM)
    return int(min(24 << 20, max(8 << 20, cap // 5)))


def _pick_rows_per_tile(R, C):
    """Rows per grid tile: whole batch elements (multiple of C), (8,128)-legal sublane dim."""
    cands = [m for m in range(C, R + 1, C)
             if R % m == 0 and (m % 8 == 0 or m == R)]
    good = [m for m in cands if m % 8 == 0]
    if good:
        le = [m for m in good if m <= 32]   # keep block-diag mix matmul cheap
        return max(le) if le else min(good)
    return R                                # full-extent sublane block is always legal


def _pick_hw_block(HW, rows, budget, cap=None):
    """Lane-block width: multiple of 128 dividing HW (or full HW), within VMEM budget."""
    if HW % 128 != 0:
        # TODO(synk): a huge HW that is not a multiple of 128 would need extra tiling;
        #             fall back to a single full-extent lane block (always legal).
        return HW
    budget_elems = budget // (16 * rows)    # 2 arrays * 2 buffers * 4 B per element row
    limit = min(HW, _LANE_BLOCK_CAP, max(128, budget_elems))
    if cap is not None:
        limit = min(limit, cap)
    best, m = 128, 128
    while m <= limit:
        if HW % m == 0:
            best = m
        m += 128
    return best


def _pick_inner(hw_blk, rows):
    """In-kernel compute-chunk width (divides hw_blk); bounds the vreg working set."""
    cap = max(128, _VREG_ELEM_CAP // max(rows, 1))
    if hw_blk <= cap:
        return hw_blk
    best = None
    for d in range(cap, 0, -1):
        if hw_blk % d == 0:
            if d % 128 == 0:
                return d
            if best is None:
                best = d
    return best if best is not None else hw_blk


# ---------------------------------------------------------------------------
# Kernel
# ---------------------------------------------------------------------------
def _make_diffusion_kernel(rows, hw_blk, inner, bf16_mix):
    n_inner = hw_blk // inner
    assert n_inner * inner == hw_blk

    def kernel(coef_ref, x_ref, n_ref, w_ref, out_ref):
        # Per-row coefficient columns (rows, 1): [alpha_t/scale, sigma_t, addm, addq, 1/scale]
        coef = coef_ref[...]
        a_col = coef[:, 0:1]
        s_col = coef[:, 1:2]
        addm_col = coef[:, 2:3]
        addq_col = coef[:, 3:4]
        invs_col = coef[:, 4:5]
        w = w_ref[...]                                   # kron(I_nseg, W), resident tile
        w_mix = w.astype(jnp.bfloat16) if bf16_mix else w  # hoisted, loop-invariant

        def chunk_sums(xs, ns):
            # Channel mix once per chunk (wq == wm by deepcopy); block-diagonal weight
            # lets one MXU dot cover all packed rows. MXU slot is idle otherwise.
            if bf16_mix:
                wx = jnp.dot(w_mix, xs.astype(jnp.bfloat16),
                             preferred_element_type=jnp.float32)
                wn = jnp.dot(w_mix, ns.astype(jnp.bfloat16),
                             preferred_element_type=jnp.float32)
            else:
                wx = jnp.dot(w_mix, xs, preferred_element_type=jnp.float32)
                wn = jnp.dot(w_mix, ns, preferred_element_type=jnp.float32)
            x_t = a_col * xs + s_col * ns                 # add_noise (scale folded in a_col)
            dm = a_col * wx + s_col * wn + addm_col - ns  # model(x_t, t) - noise
            dq = invs_col * wx + addq_col - x_t           # q_model(x, t) - x_t
            return (jnp.sum(dm * dm).reshape(1, 1),
                    jnp.sum(dq * dq).reshape(1, 1))

        if n_inner == 1:
            sm, sq = chunk_sums(x_ref[...], n_ref[...])
        else:
            def body(k, carry):
                sm_c, sq_c = carry
                col = pl.multiple_of(k * inner, inner)
                dsm, dsq = chunk_sums(x_ref[:, pl.ds(col, inner)],
                                      n_ref[:, pl.ds(col, inner)])
                return sm_c + dsm, sq_c + dsq
            sm, sq = jax.lax.fori_loop(
                0, n_inner, body,
                (jnp.zeros((1, 1), jnp.float32), jnp.zeros((1, 1), jnp.float32)),
                unroll=2)

        m_val = sm[0, 0]
        q_val = sq[0, 0]
        sub = jax.lax.broadcasted_iota(jnp.int32, (1, 1, 8, 128), 2)
        lane = jax.lax.broadcasted_iota(jnp.int32, (1, 1, 8, 128), 3)
        out_ref[...] = jnp.where(
            (sub == 0) & (lane == 0), m_val,
            jnp.where((sub == 1) & (lane == 0), q_val, 0.0))

    return kernel


# ---------------------------------------------------------------------------
# Module wrapper
# ---------------------------------------------------------------------------
class DiffusionPallas:
    """JAX/Pallas port of Diffusion (vae=None, loss_type='mse')."""

    def __init__(self, channels, n_timestep=200, data_scale=(1.0,), key=None):
        if key is None:
            key = jax.random.PRNGKey(0)
        self.C = channels
        self.noise_steps = n_timestep
        self.data_scale = jnp.asarray(data_scale, jnp.float32)   # scalar-only support
        assert self.data_scale.shape == (1,)

        betas = jnp.asarray(beta_schedule(n_timestep=n_timestep), jnp.float32)
        alphas_cumprod = jnp.cumprod(1.0 - betas)
        self.sqrt_acp = jnp.sqrt(alphas_cumprod)            # marginal_alpha(t)
        self.sqrt_1m_acp = jnp.sqrt(1.0 - alphas_cumprod)   # marginal_std(t)

        # deterministic synthetic "model" params; q_model = copy.deepcopy(model)
        k_w, k_e = jax.random.split(key)
        self.wm = (jax.random.normal(k_w, (channels, channels), jnp.float32)
                   / np.sqrt(channels))
        self.bm = jnp.zeros((channels,), jnp.float32)
        self.temb_m = 0.02 * jax.random.normal(k_e, (n_timestep, channels), jnp.float32)
        # deepcopy => identical weights; the kernel relies on wq == wm.
        self.wq, self.bq, self.temb_q = self.wm, self.bm, self.temb_m

    # ---- Pallas forward ------------------------------------------------------
    def forward_with_rand(self, x, t, noise):
        B, C, H, W = x.shape
        HW = H * W
        assert C == self.C
        R = B * C

        # Stream f32 directly; a wrapper-side bf16 cast would ADD an HBM pass.
        # TODO(synk): if the producer already emits bf16 activations, stream bf16 here.
        x2 = x.reshape(R, HW)
        n2 = noise.reshape(R, HW)

        # Per-row coefficient table (R, 5): [alpha_t/scale, sigma_t, addm, addq, 1/scale]
        inv_scale = (1.0 / self.data_scale[0]).astype(jnp.float32)
        alpha_p = (self.sqrt_acp[t] * inv_scale).astype(jnp.float32)      # (B,)
        sigma_t = self.sqrt_1m_acp[t].astype(jnp.float32)                 # (B,)
        addm = (self.bm[None, :] + self.temb_m[t]).astype(jnp.float32)    # (B, C)
        addq = (self.bq[None, :] + self.temb_q[t]).astype(jnp.float32)    # (B, C)
        coef = jnp.stack([
            jnp.repeat(alpha_p, C),
            jnp.repeat(sigma_t, C),
            addm.reshape(-1),
            addq.reshape(-1),
            jnp.full((R,), inv_scale, jnp.float32),
        ], axis=1)                                                        # (R, 5)

        # ---- tiling ----------------------------------------------------------
        budget = _input_budget_bytes()
        rows = _pick_rows_per_tile(R, C)
        num_row_tiles = R // rows
        hw_blk = _pick_hw_block(HW, rows, budget)
        num_hw_blocks = HW // hw_blk
        # v7x has 2 TensorCores: guarantee >= 2 "parallel" grid steps when possible.
        # TODO(synk): verify plain "parallel" shards across v7x cores; else CORE_PARALLEL.
        if num_row_tiles * num_hw_blocks < 2 and HW % 256 == 0:
            hw_blk = _pick_hw_block(HW, rows, budget, cap=HW // 2)
            num_hw_blocks = HW // hw_blk
        inner = _pick_inner(hw_blk, rows)

        nseg = rows // C
        w_big = jnp.kron(jnp.eye(nseg, dtype=jnp.float32), self.wm)   # block-diag mix
        bf16_mix = C > 64   # big-C only: f32 MXU dot is multi-pass emulated (slow on v5e)

        # Explicit scoped-VMEM limit derived from the actual double-buffered blocks.
        rows_pad = -(-rows // 8) * 8
        hw_pad = -(-hw_blk // 128) * 128
        r_pad = -(-rows // 128) * 128
        needed = (2 * 2 * rows_pad * hw_pad * 4       # x + noise, double-buffered
                  + 2 * rows_pad * 128 * 4            # coef table
                  + 2 * rows_pad * r_pad * 4          # kron(I, W)
                  + 2 * 8 * 128 * 4)                  # partial-sum output block
        vmem_limit = int(min(48 << 20, max(16 << 20, needed + (12 << 20))))

        kernel = _make_diffusion_kernel(rows, hw_blk, inner, bf16_mix)

        grid_spec = pltpu.PrefetchScalarGridSpec(
            num_scalar_prefetch=0,
            grid=(num_row_tiles, num_hw_blocks),
            in_specs=[
                pl.BlockSpec((rows, 5), lambda i, j: (i, 0)),        # coef columns
                pl.BlockSpec((rows, hw_blk), lambda i, j: (i, j)),   # x      (f32)
                pl.BlockSpec((rows, hw_blk), lambda i, j: (i, j)),   # noise  (f32)
                pl.BlockSpec((rows, rows), lambda i, j: (0, 0)),     # kron(I, W), resident
            ],
            out_specs=pl.BlockSpec((1, 1, 8, 128), lambda i, j: (i, j, 0, 0)),
        )

        partials = pl.pallas_call(
            kernel,
            out_shape=jax.ShapeDtypeStruct((num_row_tiles, num_hw_blocks, 8, 128),
                                           jnp.float32),
            grid_spec=grid_spec,
            compiler_params=pltpu.CompilerParams(
                dimension_semantics=("parallel", "parallel"),
                vmem_limit_bytes=vmem_limit),
        )(coef, x2, n2, w_big)

        numel = float(B * C * HW)
        model_loss = (jnp.sum(partials[:, :, 0, 0])
                      + jnp.sum(partials[:, :, 1, 0])) / numel
        recon_loss = jnp.float32(0.0)   # vae=None -> x_recon == x_ori exactly
        kld_loss = jnp.float32(0.0)     # vae is None
        return model_loss, recon_loss, kld_loss

    def forward(self, x, key):
        k_t, k_n = jax.random.split(key)
        B = x.shape[0]
        t = jax.random.randint(k_t, (B,), 1, self.noise_steps)     # sample_timesteps
        # TODO(synk): noise could be generated in-kernel (pltpu.prng_random_bits) to halve
        #             input HBM traffic; kept in the wrapper to preserve the jax.random stream.
        noise = jax.random.normal(k_n, x.shape, jnp.float32)       # randn_like
        return self.forward_with_rand(x, t, noise)

    # ---- pure-JAX reference for verification ---------------------------------
    def reference(self, x, t, noise):
        B, C, H, W = x.shape
        xr = x.reshape(B, C, H * W)
        nr = noise.reshape(B, C, H * W)
        xf = xr / self.data_scale[0]
        alpha = self.sqrt_acp[t][:, None, None]
        sigma = self.sqrt_1m_acp[t][:, None, None]
        x_t = xf * alpha + sigma * nr
        addm = (self.bm[None, :] + self.temb_m[t])[:, :, None]
        addq = (self.bq[None, :] + self.temb_q[t])[:, :, None]
        hi = jax.lax.Precision.HIGHEST
        model_out = jnp.einsum('oc,bcn->bon', self.wm, x_t, precision=hi) + addm
        q_out = jnp.einsum('oc,bcn->bon', self.wq, xf, precision=hi) + addq
        model_loss = jnp.mean((model_out - nr) ** 2) + jnp.mean((q_out - x_t) ** 2)
        return model_loss, jnp.float32(0.0), jnp.float32(0.0)


if __name__ == "__main__":
    key = jax.random.PRNGKey(0)
    k_param, k_x, k_t, k_n = jax.random.split(key, 4)

    B, C, H, W = 2, 4, 16, 16
    diff = DiffusionPallas(channels=C, n_timestep=200, data_scale=(2.0,), key=k_param)

    x = jax.random.normal(k_x, (B, C, H, W), jnp.float32)
    t = jax.random.randint(k_t, (B,), 1, diff.noise_steps)
    noise = jax.random.normal(k_n, (B, C, H, W), jnp.float32)

    out = diff.forward_with_rand(x, t, noise)
    out = jax.block_until_ready(out)
    ref = diff.reference(x, t, noise)

    for a, b in zip(out, ref):
        np.testing.assert_allclose(np.asarray(a), np.asarray(b), rtol=1e-4, atol=1e-5)

    print("KERNEL_OK")
</pallas_src>

<mosaic_0001>
module attributes {stable_mosaic.version = 11 : i64} {
  func.func @kernel(%arg0: i32, %arg1: i32, %arg2: memref<8x5xf32, #tpu.memory_space<vmem>>, %arg3: memref<8x128xf32, #tpu.memory_space<vmem>>, %arg4: memref<8x128xf32, #tpu.memory_space<vmem>>, %arg5: memref<8x8xf32, #tpu.memory_space<vmem>>, %arg6: memref<1x1x8x128xf32, #tpu.memory_space<vmem>>) attributes {dimension_semantics = [#tpu.dimension_semantics<parallel>, #tpu.dimension_semantics<parallel>], iteration_bounds = array<i64: 1, 2>, scalar_prefetch = 0 : i64, scratch_operands = 0 : i64, tpu.core_type = #tpu.core_type<tc>, window_params = [{transform_indices = @transform_0, window_bounds = array<i64: 8, 5>}, {transform_indices = @transform_1, window_bounds = array<i64: 8, 128>}, {transform_indices = @transform_2, window_bounds = array<i64: 8, 128>}, {pipeline_mode = #tpu.pipeline_mode<synchronous>, transform_indices = @transform_3, window_bounds = array<i64: 8, 8>}, {transform_indices = @transform_4, window_bounds = array<i64: 1, 1, 8, 128>}]} {
    %c0 = arith.constant 0 : index
    %c0_0 = arith.constant 0 : index
    %0 = vector.load %arg2[%c0, %c0_0] : memref<8x5xf32, #tpu.memory_space<vmem>>, vector<8x5xf32>
    %1 = vector.extract_strided_slice %0 {offsets = [0, 0], sizes = [8, 1], strides = [1, 1]} : vector<8x5xf32> to vector<8x1xf32>
    %2 = vector.extract_strided_slice %0 {offsets = [0, 1], sizes = [8, 1], strides = [1, 1]} : vector<8x5xf32> to vector<8x1xf32>
    %3 = vector.extract_strided_slice %0 {offsets = [0, 2], sizes = [8, 1], strides = [1, 1]} : vector<8x5xf32> to vector<8x1xf32>
    %4 = vector.extract_strided_slice %0 {offsets = [0, 3], sizes = [8, 1], strides = [1, 1]} : vector<8x5xf32> to vector<8x1xf32>
    %5 = vector.extract_strided_slice %0 {offsets = [0, 4], sizes = [8, 1], strides = [1, 1]} : vector<8x5xf32> to vector<8x1xf32>
    %c0_1 = arith.constant 0 : index
    %c0_2 = arith.constant 0 : index
    %6 = vector.load %arg5[%c0_1, %c0_2] : memref<8x8xf32, #tpu.memory_space<vmem>>, vector<8x8xf32>
    %c0_3 = arith.constant 0 : index
    %c0_4 = arith.constant 0 : index
    %7 = vector.load %arg3[%c0_3, %c0_4] : memref<8x128xf32, #tpu.memory_space<vmem>>, vector<8x128xf32>
    %c0_5 = arith.constant 0 : index
    %c0_6 = arith.constant 0 : index
    %8 = vector.load %arg4[%c0_5, %c0_6] : memref<8x128xf32, #tpu.memory_space<vmem>>, vector<8x128xf32>
    %cst = arith.constant dense<0.000000e+00> : vector<8x128xf32>
    %9 = tpu.matmul %6, %7, %cst {dimension_numbers = #tpu.dot_dimension_numbers<[1], [0], [0], [1], [0, 0, 1, 1], [], []>} : vector<8x8xf32>, vector<8x128xf32>, vector<8x128xf32> -> vector<8x128xf32>
    %cst_7 = arith.constant dense<0.000000e+00> : vector<8x128xf32>
    %10 = tpu.matmul %6, %8, %cst_7 {dimension_numbers = #tpu.dot_dimension_numbers<[1], [0], [0], [1], [0, 0, 1, 1], [], []>} : vector<8x8xf32>, vector<8x128xf32>, vector<8x128xf32> -> vector<8x128xf32>
    %11 = vector.broadcast %1 : vector<8x1xf32> to vector<8x128xf32>
    %12 = arith.mulf %11, %7 : vector<8x128xf32>
    %13 = vector.broadcast %2 : vector<8x1xf32> to vector<8x128xf32>
    %14 = arith.mulf %13, %8 : vector<8x128xf32>
    %15 = arith.addf %12, %14 : vector<8x128xf32>
    %16 = vector.broadcast %1 : vector<8x1xf32> to vector<8x128xf32>
    %17 = arith.mulf %16, %9 : vector<8x128xf32>
    %18 = vector.broadcast %2 : vector<8x1xf32> to vector<8x128xf32>
    %19 = arith.mulf %18, %10 : vector<8x128xf32>
    %20 = arith.addf %17, %19 : vector<8x128xf32>
    %21 = vector.broadcast %3 : vector<8x1xf32> to vector<8x128xf32>
    %22 = arith.addf %20, %21 : vector<8x128xf32>
    %23 = arith.subf %22, %8 : vector<8x128xf32>
    %24 = vector.broadcast %5 : vector<8x1xf32> to vector<8x128xf32>
    %25 = arith.mulf %24, %9 : vector<8x128xf32>
    %26 = vector.broadcast %4 : vector<8x1xf32> to vector<8x128xf32>
    %27 = arith.addf %25, %26 : vector<8x128xf32>
    %28 = arith.subf %27, %15 : vector<8x128xf32>
    %29 = arith.mulf %23, %23 : vector<8x128xf32>
    %30 = vector.shape_cast %29 : vector<8x128xf32> to vector<1x8x128xf32>
    %cst_8 = arith.constant dense<0.000000e+00> : vector<1xf32>
    %31 = vector.multi_reduction <add>, %30, %cst_8 [1, 2] : vector<1x8x128xf32> to vector<1xf32>
    %32 = vector.shape_cast %31 : vector<1xf32> to vector<1x1x1xf32>
    %33 = vector.extract %32[0, 0, 0] : f32 from vector<1x1x1xf32>
    %34 = vector.broadcast %33 : f32 to vector<1x1xf32>
    %35 = arith.mulf %28, %28 : vector<8x128xf32>
    %36 = vector.shape_cast %35 : vector<8x128xf32> to vector<1x8x128xf32>
    %cst_9 = arith.constant dense<0.000000e+00> : vector<1xf32>
    %37 = vector.multi_reduction <add>, %36, %cst_9 [1, 2] : vector<1x8x128xf32> to vector<1xf32>
    %38 = vector.shape_cast %37 : vector<1xf32> to vector<1x1x1xf32>
    %39 = vector.extract %38[0, 0, 0] : f32 from vector<1x1x1xf32>
    %40 = vector.broadcast %39 : f32 to vector<1x1xf32>
    %41 = vector.extract %34[0, 0] : f32 from vector<1x1xf32>
    %42 = vector.extract %40[0, 0] : f32 from vector<1x1xf32>
    %43 = tpu.iota {dimensions = array<i32: 2>} : vector<1x1x8x128xi32>
    %44 = tpu.iota {dimensions = array<i32: 3>} : vector<1x1x8x128xi32>
    %c0_i32 = arith.constant 0 : i32
    %45 = vector.broadcast %c0_i32 : i32 to vector<1x1x8x128xi32>
    %46 = arith.cmpi eq, %43, %45 : vector<1x1x8x128xi32>
    %c0_i32_10 = arith.constant 0 : i32
    %47 = vector.broadcast %c0_i32_10 : i32 to vector<1x1x8x128xi32>
    %48 = arith.cmpi eq, %44, %47 : vector<1x1x8x128xi32>
    %49 = arith.andi %46, %48 : vector<1x1x8x128xi1>
    %c1_i32 = arith.constant 1 : i32
    %50 = vector.broadcast %c1_i32 : i32 to vector<1x1x8x128xi32>
    %51 = arith.cmpi eq, %43, %50 : vector<1x1x8x128xi32>
    %c0_i32_11 = arith.constant 0 : i32
    %52 = vector.broadcast %c0_i32_11 : i32 to vector<1x1x8x128xi32>
    %53 = arith.cmpi eq, %44, %52 : vector<1x1x8x128xi32>
    %54 = arith.andi %51, %53 : vector<1x1x8x128xi1>
    %cst_12 = arith.constant 0.000000e+00 : f32
    %55 = vector.broadcast %42 : f32 to vector<1x1x8x128xf32>
    %56 = vector.broadcast %cst_12 : f32 to vector<1x1x8x128xf32>
    %57 = arith.select %54, %55, %56 : vector<1x1x8x128xi1>, vector<1x1x8x128xf32>
    %58 = vector.broadcast %41 : f32 to vector<1x1x8x128xf32>
    %59 = arith.select %49, %58, %57 : vector<1x1x8x128xi1>, vector<1x1x8x128xf32>
    %c0_13 = arith.constant 0 : index
    %c0_14 = arith.constant 0 : index
    %c0_15 = arith.constant 0 : index
    %c0_16 = arith.constant 0 : index
    %60 = vector.load %arg6[%c0_13, %c0_14, %c0_15, %c0_16] : memref<1x1x8x128xf32, #tpu.memory_space<vmem>>, vector<1x1x8x128xf32>
    tpu.vector_store %arg6[%c0_13, %c0_14, %c0_15, %c0_16], %59 {strides = array<i32>} : memref<1x1x8x128xf32, #tpu.memory_space<vmem>>, vector<1x1x8x128xf32>,
    return
  }
  func.func @transform_0(%arg0: i32, %arg1: i32) -> (i32, i32) {
    %c0_i32 = arith.constant 0 : i32
    %c0_i32_0 = arith.constant 0 : i32
    return %arg0, %c0_i32 : i32, i32
  }
  func.func @transform_1(%arg0: i32, %arg1: i32) -> (i32, i32) {
    %c0_i32 = arith.constant 0 : i32
    return %arg0, %arg1 : i32, i32
  }
  func.func @transform_2(%arg0: i32, %arg1: i32) -> (i32, i32) {
    %c0_i32 = arith.constant 0 : i32
    return %arg0, %arg1 : i32, i32
  }
  func.func @transform_3(%arg0: i32, %arg1: i32) -> (i32, i32) {
    %c0_i32 = arith.constant 0 : i32
    %c0_i32_0 = arith.constant 0 : i32
    %c0_i32_1 = arith.constant 0 : i32
    return %c0_i32, %c0_i32_0 : i32, i32
  }
  func.func @transform_4(%arg0: i32, %arg1: i32) -> (i32, i32, i32, i32) {
    %c0_i32 = arith.constant 0 : i32
    %c0_i32_0 = arith.constant 0 : i32
    %c0_i32_1 = arith.constant 0 : i32
    return %arg0, %arg1, %c0_i32, %c0_i32_0 : i32, i32, i32, i32
  }
}

</mosaic_0001>

<llo_original>
// kernel: tpu_custom_call.1
$region0: #{tpu_custom_call.1}
  #allocation0 [shape = 'u32[]', space=smem, size = 0x4, offset = 0x4, fixed_abs, tag = 'smem constant byte address 0x4 - core index']
  #allocation1 [shape = 'u32[144,128]{1,0:T(1,128)}', space=vmem, size = 0x12000, scoped, tag = 'internal scratch']
  %s0 = inlined_call_operand.hbm [shape: f32[8,5], index: 0, kind: input, shape index: {}]
  %s1 = inlined_call_operand.hbm [shape: f32[8,256], index: 1, kind: input, shape index: {}]
  %s2 = inlined_call_operand.hbm [shape: f32[8,256], index: 2, kind: input, shape index: {}]
  %s3 = inlined_call_operand.vmem [shape: f32[8,8], index: 3, kind: input, shape index: {}]
  %s4 = inlined_call_operand.hbm [shape: f32[1,2,8,128], index: 4, kind: output, shape index: {}]
  %s5 = sld [smem:[#allocation0]]
  $region61: #{tpu_custom_call.1} parent=0
    _
  %s7 = ssub.s32 1, %s5
  %s8 = scalar_select 0, %s7, %s5
  $region1: #{tpu_custom_call.1} parent=0
    #allocation2 [shape = 'u8[4096]{0}', space=vmem, size = 0x1000, scoped, tag = 'input window, operand 0, single buffered']
    #allocation3 [shape = 's32[2]{0}', space=sflag, size = 0x8, scoped, tag = 'scoped memory for tpu_custom_call.1']
    #allocation4 [shape = 's32[2]{0}', space=sflag, size = 0x8, scoped, tag = 'scoped memory for tpu_custom_call.1']
    #allocation5 [shape = 'u8[8192]{0}', space=vmem, size = 0x2000, scoped, tag = 'input window, operand 1']
    #allocation6 [shape = 's32[2]{0}', space=sflag, size = 0x8, scoped, tag = 'scoped memory for tpu_custom_call.1']
    #allocation7 [shape = 'u8[8192]{0}', space=vmem, size = 0x2000, scoped, tag = 'input window, operand 2']
    #allocation8 [shape = 'u8[8192]{0}', space=vmem, size = 0x2000, scoped, tag = 'output window, operand 0']
    %9 = vsyncpa [#allocation3], 0
    %10 = vsyncpa [#allocation6], 0
    %s11 = scalar_lea.sflag [#allocation6], 1
    %12 = vsyncpa %s11, 0
    %13 = vsyncpa [#allocation4], 0
    %s14 = scalar_lea.sflag [#allocation4], 1
    %15 = vsyncpa %s14, 0
    loop: start=0, step=1, limit=4
    $region2: #{tpu_custom_call.1} parent=1 // loop_pre_header
      _
    $region3: #{tpu_custom_call.1} parent=1 // loop_header
      %s17 = sphi 0, %s21
      %p18 = scmp.ge.s32.totalorder %s17, 4
      %s24 = sphi 0, %s36
      %s25 = sphi 0, %s32
      %s26 = sphi 0, %s24
      %s27 = sphi 0, %s25
      %s28 = sphi 0, %s26
      %s29 = sphi 0, %s27
      %s39 = sphi 0, %s41
      %s42 = sphi 0, %s39
      %s43 = sphi 0, %s42
      %s59 = sphi 0, %s43
      %s67 = sphi 0, %s69
      %s70 = sphi 0, %s67
      %s71 = sphi 0, %s70
      %s87 = sphi 0, %s71
      %s95 = sphi 0, %s97
      %s98 = sphi 0, %s95
      %s99 = sphi 0, %s98
      %s115 = sphi 0, %s99
      %s119 = sphi 0, %s119
      %s121 = sphi 0, %s119
      %s122 = sphi 0, %s121
      %s136 = sphi 0, %s122
      %s144 = sphi 0, %s146
      %s147 = sphi 0, %s144
      %s148 = sphi 0, %s147
      %s164 = sphi 0, %s148
    $region4: #{tpu_custom_call.1} parent=1 // loop_header_branch
      %20 = sbr.rel (%p18) target = $region8
    $region5: #{tpu_custom_call.1} parent=1 // loop_body
      %s22 = ssub.s32 %s17, 1
      %s23 = ssub.s32 %s17, 2
      %s30 = sadd.s32 1, %s25
      %p31 = scmp.ge.s32.totalorder %s30, 2
      %s32 = scalar_select %p31, 0, %s30
      %s33 = sadd.s32 1, %s24
      %s34 = scalar_select %p31, %s33, %s24
      %p35 = scmp.ge.s32.totalorder %s34, 1
      %s36 = scalar_select %p35, 0, %s34
      %s37 = ssub.s32 %s24, %s36
      %p38 = scmp.eq.s32.totalorder %s37, 0
      %s40 = sadd.s32 %s39, 1
      %s41 = scalar_select %p38, %s39, %s40
      %p44 = pneg %p38
      %p45 = scmp.eq.s32.totalorder %s17, 1
      %p46 = por %p44, %p45
      %p47 = scmp.ne.s32.totalorder %s39, %s42
      %p48 = scmp.eq.s32.totalorder %s17, 0
      %p49 = por %p47, %p48
      %p50 = scmp.ne.s32.totalorder %s39, %s42
      %p51 = scmp.eq.s32.totalorder %s22, 1
      %p52 = por %p50, %p51
      %p53 = scmp.ne.s32.totalorder %s42, %s43
      %p54 = scmp.eq.s32.totalorder %s22, 0
      %p55 = por %p53, %p54
      %p56 = scmp.ne.s32.totalorder %s42, %s43
      %p57 = scmp.eq.s32.totalorder %s23, 1
      %p58 = por %p56, %p57
      %p60 = scmp.ne.s32.totalorder %s43, %s59
      %p61 = scmp.eq.s32.totalorder %s23, 0
      %p62 = por %p60, %p61
      %s63 = ssub.s32 %s24, %s36
      %s64 = ssub.s32 %s25, %s32
      %s65 = sor.u32 %s63, %s64
      %p66 = scmp.eq.s32.totalorder %s65, 0
      %s68 = sadd.s32 %s67, 1
      %s69 = scalar_select %p66, %s67, %s68
      %p72 = pneg %p66
      %p73 = scmp.eq.s32.totalorder %s17, 1
      %p74 = por %p72, %p73
      %p75 = scmp.ne.s32.totalorder %s67, %s70
      %p76 = scmp.eq.s32.totalorder %s17, 0
      %p77 = por %p75, %p76
      %p78 = scmp.ne.s32.totalorder %s67, %s70
      %p79 = scmp.eq.s32.totalorder %s22, 1
      %p80 = por %p78, %p79
      %p81 = scmp.ne.s32.totalorder %s70, %s71
      %p82 = scmp.eq.s32.totalorder %s22, 0
      %p83 = por %p81, %p82
      %p84 = scmp.ne.s32.totalorder %s70, %s71
      %p85 = scmp.eq.s32.totalorder %s23, 1
      %p86 = por %p84, %p85
      %p88 = scmp.ne.s32.totalorder %s71, %s87
      %p89 = scmp.eq.s32.totalorder %s23, 0
      %p90 = por %p88, %p89
      %s91 = ssub.s32 %s24, %s36
      %s92 = ssub.s32 %s25, %s32
      %s93 = sor.u32 %s91, %s92
      %p94 = scmp.eq.s32.totalorder %s93, 0
      %s96 = sadd.s32 %s95, 1
      %s97 = scalar_select %p94, %s95, %s96
      %p100 = pneg %p94
      %p101 = scmp.eq.s32.totalorder %s17, 1
      %p102 = por %p100, %p101
      %p103 = scmp.ne.s32.totalorder %s95, %s98
      %p104 = scmp.eq.s32.totalorder %s17, 0
      %p105 = por %p103, %p104
      %p106 = scmp.ne.s32.totalorder %s95, %s98
      %p107 = scmp.eq.s32.totalorder %s22, 1
      %p108 = por %p106, %p107
      %p109 = scmp.ne.s32.totalorder %s98, %s99
      %p110 = scmp.eq.s32.totalorder %s22, 0
      %p111 = por %p109, %p110
      %p112 = scmp.ne.s32.totalorder %s98, %s99
      %p113 = scmp.eq.s32.totalorder %s23, 1
      %p114 = por %p112, %p113
      %p116 = scmp.ne.s32.totalorder %s99, %s115
      %p117 = scmp.eq.s32.totalorder %s23, 0
      %p118 = por %p116, %p117
      %s120 = sadd.s32 %s119, 1
      %p123 = scmp.eq.s32.totalorder %s17, 1
      %p124 = scmp.ne.s32.totalorder %s119, %s121
      %p125 = scmp.eq.s32.totalorder %s17, 0
      %p126 = por %p124, %p125
      %p127 = scmp.ne.s32.totalorder %s119, %s121
      %p128 = scmp.eq.s32.totalorder %s22, 1
      %p129 = por %p127, %p128
      %p130 = scmp.ne.s32.totalorder %s121, %s122
      %p131 = scmp.eq.s32.totalorder %s22, 0
      %p132 = por %p130, %p131
      %p133 = scmp.ne.s32.totalorder %s121, %s122
      %p134 = scmp.eq.s32.totalorder %s23, 1
      %p135 = por %p133, %p134
      %p137 = scmp.ne.s32.totalorder %s122, %s136
      %p138 = scmp.eq.s32.totalorder %s23, 0
      %p139 = por %p137, %p138
      %s140 = ssub.s32 %s24, %s36
      %s141 = ssub.s32 %s25, %s32
      %s142 = sor.u32 %s140, %s141
      %p143 = scmp.eq.s32.totalorder %s142, 0
      %s145 = sadd.s32 %s144, 1
      %s146 = scalar_select %p143, %s144, %s145
      %p149 = pneg %p143
      %p150 = scmp.eq.s32.totalorder %s17, 1
      %p151 = por %p149, %p150
      %p152 = scmp.ne.s32.totalorder %s144, %s147
      %p153 = scmp.eq.s32.totalorder %s17, 0
      %p154 = por %p152, %p153
      %p155 = scmp.ne.s32.totalorder %s144, %s147
      %p156 = scmp.eq.s32.totalorder %s22, 1
      %p157 = por %p155, %p156
      %p158 = scmp.ne.s32.totalorder %s147, %s148
      %p159 = scmp.eq.s32.totalorder %s22, 0
      %p160 = por %p158, %p159
      %p161 = scmp.ne.s32.totalorder %s147, %s148
      %p162 = scmp.eq.s32.totalorder %s23, 1
      %p163 = por %p161, %p162
      %p165 = scmp.ne.s32.totalorder %s148, %s164
      %p166 = scmp.eq.s32.totalorder %s23, 0
      %p167 = por %p165, %p166
      %p168 = scmp.le.s32.totalorder 1, %s17
      %p169 = scmp.lt.s32.totalorder %s17, 3
      %p170 = pnand %p168, %p169
      %p171 = pneg %p170
      // Predicated region
      $region9: #{tpu_custom_call.1} parent=5 // pred_check
        _
      $region10: #{tpu_custom_call.1} parent=5 // pred_check_branch
        %173 = sbr.rel (%p170) target = $region12
      $region11: #{tpu_custom_call.1} parent=5 // pred_region
        %s174 = ssub.s32 %s17, 1
        // Predicated region
        $region13: #{tpu_custom_call.1} parent=11 // pred_check
          %p175 = pneg %p55
        $region14: #{tpu_custom_call.1} parent=11 // pred_check_branch
          %177 = sbr.rel (%p175) target = $region16
        $region15: #{tpu_custom_call.1} parent=11 // pred_region
          %s179 = ssub.s32 128, 128
          %180 = vsyncadd [#allocation3], %s179
          %s181 = smul.addr %s26, 128
          %s182 = scalar_lea.hbm %s0, %s181
          %s184 = sshll.u32 [#allocation2], 4
          %s185 = int_to_ptr.vmem [resolvable:$true] %s184
          %187 = dma.hbm_to_vmem [thread:$0]  %s182, 128, %s185, [#allocation3]
        $region16: #{tpu_custom_call.1} parent=11 // pred_fallthru
          _
        // Predicated region
        $region17: #{tpu_custom_call.1} parent=11 // pred_check
          %p188 = pneg %p132
        $region18: #{tpu_custom_call.1} parent=11 // pred_check_branch
          %190 = sbr.rel (%p188) target = $region20
        $region19: #{tpu_custom_call.1} parent=11 // pred_region
          _
        $region20: #{tpu_custom_call.1} parent=11 // pred_fallthru
          _
      $region12: #{tpu_custom_call.1} parent=5 // pred_fallthru
        _
      %p191 = scmp.lt.s32.totalorder %s17, 2
      // Predicated region
      $region21: #{tpu_custom_call.1} parent=5 // pred_check
        %p192 = pneg %p191
      $region22: #{tpu_custom_call.1} parent=5 // pred_check_branch
        %194 = sbr.rel (%p192) target = $region24
      $region23: #{tpu_custom_call.1} parent=5 // pred_region
        // Predicated region
        $region25: #{tpu_custom_call.1} parent=23 // pred_check
          %p195 = pneg %p77
        $region26: #{tpu_custom_call.1} parent=23 // pred_check_branch
          %197 = sbr.rel (%p195) target = $region28
        $region27: #{tpu_custom_call.1} parent=23 // pred_region
          %s198 = sand.u32 %s17, 1
          %s199 = scalar_lea.sflag [#allocation6], %s198
          %s200 = sand.u32 %s67, 1
          %s201 = smul.addr %s200, 8
          %s202 = scalar_lea.vmem [#allocation5], %s201
          %s204 = ssub.s32 128, 128
          %205 = vsyncadd %s199, %s204
          %s206 = smul.addr %s24, 2
          %s207 = sadd.s32 %s25, %s206
          %s208 = smul.addr %s207, 128
          %s209 = scalar_lea.hbm %s1, %s208
          %s211 = sshll.u32 %s202, 4
          %s212 = int_to_ptr.vmem [resolvable:$true] %s211
          %214 = dma.hbm_to_vmem [thread:$0]  %s209, 128, %s212, %s199
        $region28: #{tpu_custom_call.1} parent=23 // pred_fallthru
          _
        // Predicated region
        $region29: #{tpu_custom_call.1} parent=23 // pred_check
          %p215 = pneg %p105
        $region30: #{tpu_custom_call.1} parent=23 // pred_check_branch
          %217 = sbr.rel (%p215) target = $region32
        $region31: #{tpu_custom_call.1} parent=23 // pred_region
          %s218 = sand.u32 %s17, 1
          %s219 = scalar_lea.sflag [#allocation6], %s218
          %s220 = sand.u32 %s95, 1
          %s221 = smul.addr %s220, 8
          %s222 = scalar_lea.vmem [#allocation7], %s221
          %s224 = ssub.s32 128, 128
          %225 = vsyncadd %s219, %s224
          %s226 = smul.addr %s24, 2
          %s227 = sadd.s32 %s25, %s226
          %s228 = smul.addr %s227, 128
          %s229 = scalar_lea.hbm %s2, %s228
          %s231 = sshll.u32 %s222, 4
          %s232 = int_to_ptr.vmem [resolvable:$true] %s231
          %234 = dma.hbm_to_vmem [thread:$0]  %s229, 128, %s232, %s219
        $region32: #{tpu_custom_call.1} parent=23 // pred_fallthru
          _
      $region24: #{tpu_custom_call.1} parent=5 // pred_fallthru
        _
      %p235 = scmp.le.s32.totalorder 1, %s17
      %p236 = scmp.lt.s32.totalorder %s17, 3
      %p237 = pnand %p235, %p236
      %p238 = pneg %p237
      // Predicated region
      $region33: #{tpu_custom_call.1} parent=5 // pred_check
        _
      $region34: #{tpu_custom_call.1} parent=5 // pred_check_branch
        %240 = sbr.rel (%p237) target = $region36
      $region35: #{tpu_custom_call.1} parent=5 // pred_region
        %s241 = ssub.s32 %s17, 1
        // Predicated region
        $region37: #{tpu_custom_call.1} parent=35 // pred_check
          %p242 = pneg %p55
        $region38: #{tpu_custom_call.1} parent=35 // pred_check_branch
          %244 = sbr.rel (%p242) target = $region40
        $region39: #{tpu_custom_call.1} parent=35 // pred_region
          %245 = dma.done [#allocation3], 128
        $region40: #{tpu_custom_call.1} parent=35 // pred_fallthru
          _
        %s246 = sand.u32 %s22, 1
        %s247 = scalar_lea.sflag [#allocation6], %s246
        %s248 = sand.u32 %s70, 1
        %s249 = smul.addr %s248, 8
        %s250 = scalar_lea.vmem [#allocation5], %s249
        // Predicated region
        $region41: #{tpu_custom_call.1} parent=35 // pred_check
          %p251 = pneg %p83
        $region42: #{tpu_custom_call.1} parent=35 // pred_check_branch
          %253 = sbr.rel (%p251) target = $region44
        $region43: #{tpu_custom_call.1} parent=35 // pred_region
          %254 = dma.done %s247, 128
        $region44: #{tpu_custom_call.1} parent=35 // pred_fallthru
          _
        %s255 = sand.u32 %s22, 1
        %s256 = scalar_lea.sflag [#allocation6], %s255
        %s257 = sand.u32 %s98, 1
        %s258 = smul.addr %s257, 8
        %s259 = scalar_lea.vmem [#allocation7], %s258
        // Predicated region
        $region45: #{tpu_custom_call.1} parent=35 // pred_check
          %p260 = pneg %p111
        $region46: #{tpu_custom_call.1} parent=35 // pred_check_branch
          %262 = sbr.rel (%p260) target = $region48
        $region47: #{tpu_custom_call.1} parent=35 // pred_region
          %263 = dma.done %s256, 128
        $region48: #{tpu_custom_call.1} parent=35 // pred_fallthru
          _
        %p264 = pneg %p55
        %p265 = pneg %p52
        %s266 = sand.u32 %s22, 1
        %s267 = scalar_lea.sflag [#allocation6], %s266
        %s268 = sand.u32 %s70, 1
        %s269 = smul.addr %s268, 8
        %s270 = scalar_lea.vmem [#allocation5], %s269
        %p271 = pneg %p83
        %p272 = pneg %p80
        %s273 = sand.u32 %s22, 1
        %s274 = scalar_lea.sflag [#allocation6], %s273
        %s275 = sand.u32 %s98, 1
        %s276 = smul.addr %s275, 8
        %s277 = scalar_lea.vmem [#allocation7], %s276
        %p278 = pneg %p111
        %p279 = pneg %p108
        %p280 = pneg %p132
        %p281 = pneg %p129
        %p282 = pneg %p160
        %p283 = pneg %p157
        %s284 = sand.u32 %s147, 1
        %s285 = scalar_lea.sflag [#allocation4], %s284
        %s286 = sand.u32 %s147, 1
        %s287 = smul.addr %s286, 8
        %s288 = scalar_lea.vmem [#allocation8], %s287
        %v289 = vld [vmem:[#allocation2] sm:$0xff]
        %v290 = vld [vmem:[%s3] sm:$0xff]
        %v291 = vld [vmem:[%s250] sm:$0xff]
        %v292 = vld [vmem:[%s259] sm:$0xff]
        %vm293 = vcmask 64512
        %v295 = vsel %vm293, %v290, 0
        %297 = vmatprep.subr.mxu0 0.0
        %298 = vmatpush1.msra.mxu0 %v291
        %299 = vmatprep.subr.mxu0 0.0
        %300 = vmatpush1.msra.mxu0 0.0
        %301 = vmatprep.subr.mxu0 0.0
        %302 = vmatpush1.msra.mxu0 0.0
        %303 = vmatprep.subr.mxu0 0.0
        %304 = vmatpush1.msra.mxu0 0.0
        %305 = vmatprep.subr.mxu0 0.0
        %306 = vmatpush1.msra.mxu0 0.0
        %307 = vmatprep.subr.mxu0 0.0
        %308 = vmatpush1.msra.mxu0 0.0
        %309 = vmatprep.subr.mxu0 0.0
        %310 = vmatpush1.msra.mxu0 0.0
        %311 = vmatprep.subr.mxu0 0.0
        %312 = vmatpush1.msra.mxu0 0.0
        %313 = vmatprep.subr.mxu0 0.0
        %314 = vmatpush1.msra.mxu0 0.0
        %315 = vmatprep.subr.mxu0 0.0
        %316 = vmatpush1.msra.mxu0 0.0
        %317 = vmatprep.subr.mxu0 0.0
        %318 = vmatpush1.msra.mxu0 0.0
        %319 = vmatprep.subr.mxu0 0.0
        %320 = vmatpush1.msra.mxu0 0.0
        %321 = vmatprep.subr.mxu0 0.0
        %322 = vmatpush1.msra.mxu0 0.0
        %323 = vmatprep.subr.mxu0 0.0
        %324 = vmatpush1.msra.mxu0 0.0
        %325 = vmatprep.subr.mxu0 0.0
        %326 = vmatpush1.msra.mxu0 0.0
        %327 = vmatprep.subr.mxu0 0.0
        %328 = vmatpush1.msra.mxu0 0.0
        %329 = vmatprep.subr.mxu0 0.0
        %330 = vmatpush1.msra.mxu0 0.0
        %331 = vmatprep.subr.mxu0 0.0
        %332 = vmatpush1.msra.mxu0 0.0
        %333 = vmatprep.subr.mxu0 0.0
        %334 = vmatpush1.msra.mxu0 0.0
        %335 = vmatprep.subr.mxu0 0.0
        %336 = vmatpush1.msra.mxu0 0.0
        %337 = vmatprep.subr.mxu0 0.0
        %338 = vmatpush1.msra.mxu0 0.0
        %339 = vmatprep.subr.mxu0 0.0
        %340 = vmatpush1.msra.mxu0 0.0
        %341 = vmatprep.subr.mxu0 0.0
        %342 = vmatpush1.msra.mxu0 0.0
        %343 = vmatprep.subr.mxu0 0.0
        %344 = vmatpush1.msra.mxu0 0.0
        %345 = vmatprep.subr.mxu0 0.0
        %346 = vmatpush1.msra.mxu0 0.0
        %347 = vmatprep.subr.mxu0 0.0
        %348 = vmatpush1.msra.mxu0 0.0
        %349 = vmatprep.subr.mxu0 0.0
        %350 = vmatpush1.msra.mxu0 0.0
        %351 = vmatprep.subr.mxu0 0.0
        %352 = vmatpush1.msra.mxu0 0.0
        %353 = vmatprep.subr.mxu0 0.0
        %354 = vmatpush1.msra.mxu0 0.0
        %355 = vmatprep.subr.mxu0 0.0
        %356 = vmatpush1.msra.mxu0 0.0
        %357 = vmatprep.subr.mxu0 0.0
        %358 = vmatpush1.msra.mxu0 0.0
        %359 = vmatprep.subr.mxu0 0.0
        %360 = vmatpush1.msra.mxu0 0.0
        %361 = vmatprep.mubr.f32.mxu0 0.0
        %362 = vmatmul.mubr.f32.gmra.mrb[0].mxu0 %v295
        %v363 = vpop.f32.mrb[0].mxu0
        %v364 = vadd.f32 0.0, %v363
        %v365 = vpop.f32.mrb[0].mxu0
        %366 = vdwg.mxu0
        %367 = vmatprep.subr.mxu0 0.0
        %368 = vmatpush1.msra.mxu0 %v292
        %369 = vmatprep.subr.mxu0 0.0
        %370 = vmatpush1.msra.mxu0 0.0
        %371 = vmatprep.subr.mxu0 0.0
        %372 = vmatpush1.msra.mxu0 0.0
        %373 = vmatprep.subr.mxu0 0.0
        %374 = vmatpush1.msra.mxu0 0.0
        %375 = vmatprep.subr.mxu0 0.0
        %376 = vmatpush1.msra.mxu0 0.0
        %377 = vmatprep.subr.mxu0 0.0
        %378 = vmatpush1.msra.mxu0 0.0
        %379 = vmatprep.subr.mxu0 0.0
        %380 = vmatpush1.msra.mxu0 0.0
        %381 = vmatprep.subr.mxu0 0.0
        %382 = vmatpush1.msra.mxu0 0.0
        %383 = vmatprep.subr.mxu0 0.0
        %384 = vmatpush1.msra.mxu0 0.0
        %385 = vmatprep.subr.mxu0 0.0
        %386 = vmatpush1.msra.mxu0 0.0
        %387 = vmatprep.subr.mxu0 0.0
        %388 = vmatpush1.msra.mxu0 0.0
        %389 = vmatprep.subr.mxu0 0.0
        %390 = vmatpush1.msra.mxu0 0.0
        %391 = vmatprep.subr.mxu0 0.0
        %392 = vmatpush1.msra.mxu0 0.0
        %393 = vmatprep.subr.mxu0 0.0
        %394 = vmatpush1.msra.mxu0 0.0
        %395 = vmatprep.subr.mxu0 0.0
        %396 = vmatpush1.msra.mxu0 0.0
        %397 = vmatprep.subr.mxu0 0.0
        %398 = vmatpush1.msra.mxu0 0.0
        %399 = vmatprep.subr.mxu0 0.0
        %400 = vmatpush1.msra.mxu0 0.0
        %401 = vmatprep.subr.mxu0 0.0
        %402 = vmatpush1.msra.mxu0 0.0
        %403 = vmatprep.subr.mxu0 0.0
        %404 = vmatpush1.msra.mxu0 0.0
        %405 = vmatprep.subr.mxu0 0.0
        %406 = vmatpush1.msra.mxu0 0.0
        %407 = vmatprep.subr.mxu0 0.0
        %408 = vmatpush1.msra.mxu0 0.0
        %409 = vmatprep.subr.mxu0 0.0
        %410 = vmatpush1.msra.mxu0 0.0
        %411 = vmatprep.subr.mxu0 0.0
        %412 = vmatpush1.msra.mxu0 0.0
        %413 = vmatprep.subr.mxu0 0.0
        %414 = vmatpush1.msra.mxu0 0.0
        %415 = vmatprep.subr.mxu0 0.0
        %416 = vmatpush1.msra.mxu0 0.0
        %417 = vmatprep.subr.mxu0 0.0
        %418 = vmatpush1.msra.mxu0 0.0
        %419 = vmatprep.subr.mxu0 0.0
        %420 = vmatpush1.msra.mxu0 0.0
        %421 = vmatprep.subr.mxu0 0.0
        %422 = vmatpush1.msra.mxu0 0.0
        %423 = vmatprep.subr.mxu0 0.0
        %424 = vmatpush1.msra.mxu0 0.0
        %425 = vmatprep.subr.mxu0 0.0
        %426 = vmatpush1.msra.mxu0 0.0
        %427 = vmatprep.subr.mxu0 0.0
        %428 = vmatpush1.msra.mxu0 0.0
        %429 = vmatprep.subr.mxu0 0.0
        %430 = vmatpush1.msra.mxu0 0.0
        %431 = vmatprep.mubr.f32.mxu0 0.0
        %432 = vmatmul.mubr.f32.gmra.mrb[0].mxu0 %v295
        %v433 = vpop.f32.mrb[0].mxu0
        %v434 = vadd.f32 0.0, %v433
        %v435 = vpop.f32.mrb[0].mxu0
        %436 = vdwg.mxu0
        %438 = vset.pattern.permute.xlu0 0
        %439 = vperm.xlu0 %438, %v289
        %v440 = vpop.permute.xlu0 %439
        %v442 = vmul.f32 %v440, %v291
        %443 = vset.pattern.permute.xlu0 1
        %444 = vperm.xlu0 %443, %v289
        %v445 = vpop.permute.xlu0 %444
        %v447 = vmul.f32 %v445, %v292
        %v448 = vadd.f32 %v442, %v447
        %v449 = vmul.f32 %v440, %v364
        %v450 = vmul.f32 %v445, %v434
        %v451 = vadd.f32 %v449, %v450
        %452 = vset.pattern.permute.xlu0 2
        %453 = vperm.xlu0 %452, %v289
        %v454 = vpop.permute.xlu0 %453
        %v456 = vadd.f32 %v451, %v454
        %v457 = vsub.f32 %v456, %v292
        %458 = vset.pattern.permute.xlu0 4
        %459 = vperm.xlu0 %458, %v289
        %v460 = vpop.permute.xlu0 %459
        %v462 = vmul.f32 %v460, %v364
        %463 = vset.pattern.permute.xlu0 3
        %464 = vperm.xlu0 %463, %v289
        %v465 = vpop.permute.xlu0 %464
        %v467 = vadd.f32 %v462, %v465
        %v468 = vsub.f32 %v467, %v448
        %v469 = vmul.f32 %v457, %v457
        %470 = vadd.xlane.f32.xlu0 %v469
        %v471 = vpop.xlane.xlu0 %470
        %v472 = vrot.slane %v471, 4
        %v473 = vadd.f32 %v471, %v472
        %v474 = vrot.slane %v473, 2
        %v475 = vadd.f32 %v473, %v474
        %v476 = vrot.slane %v475, 1
        %v477 = vadd.f32 %v475, %v476
        %s478 = vtos %v477
        %v479 = vmul.f32 %v468, %v468
        %480 = vadd.xlane.f32.xlu0 %v479
        %v481 = vpop.xlane.xlu0 %480
        %v482 = vrot.slane %v481, 4
        %v483 = vadd.f32 %v481, %v482
        %v484 = vrot.slane %v483, 2
        %v485 = vadd.f32 %v483, %v484
        %v486 = vrot.slane %v485, 1
        %v487 = vadd.f32 %v485, %v486
        %s488 = vtos %v487
        %v489 = vlaneseq
        %v490 = vshrl.u32 %v489, 7
        %v491 = vlaneseq
        %v492 = vand.u32 %v491, 127
        %vm493 = vcmp.eq.s32.totalorder %v490, 0
        %vm494 = vcmp.eq.s32.totalorder %v492, 0
        %vm495 = vmand %vm493, %vm494
        %vm496 = vcmp.eq.s32.totalorder %v490, 1
        %vm497 = vmand %vm496, %vm494
        %v498 = vstv %s488
        %v499 = vsel %vm497, %v498, 0.0
        %v500 = vstv %s478
        %v501 = vsel %vm495, %v500, %v499
        %502 = vst [vmem:[%s288] sm:$0xff] %v501
        %s503 = sand.u32 %s147, 1
        %s504 = scalar_lea.sflag [#allocation4], %s503
        %s505 = sand.u32 %s147, 1
        %s506 = smul.addr %s505, 8
        %s507 = scalar_lea.vmem [#allocation8], %s506
        // Predicated region
        $region49: #{tpu_custom_call.1} parent=35 // pred_check
          %p508 = pneg %p157
        $region50: #{tpu_custom_call.1} parent=35 // pred_check_branch
          %510 = sbr.rel (%p508) target = $region52
        $region51: #{tpu_custom_call.1} parent=35 // pred_region
          %s512 = ssub.s32 128, 128
          %513 = vsyncadd %s504, %s512
          %s514 = smul.addr %s26, 2
          %s515 = sadd.s32 %s27, %s514
          %s516 = smul.addr %s515, 128
          %s517 = scalar_lea.hbm %s4, %s516
          %s519 = sshll.u32 %s507, 4
          %s520 = int_to_ptr.vmem [resolvable:$true] %s519
          %522 = dma.vmem_to_hbm [thread:$0]  %s520, 128, %s517, %s504
        $region52: #{tpu_custom_call.1} parent=35 // pred_fallthru
          _
      $region36: #{tpu_custom_call.1} parent=5 // pred_fallthru
        _
      %p523 = scmp.le.s32.totalorder 2, %s17
      // Predicated region
      $region53: #{tpu_custom_call.1} parent=5 // pred_check
        %p524 = pneg %p523
      $region54: #{tpu_custom_call.1} parent=5 // pred_check_branch
        %526 = sbr.rel (%p524) target = $region56
      $region55: #{tpu_custom_call.1} parent=5 // pred_region
        %s527 = ssub.s32 %s17, 2
        // Predicated region
        $region57: #{tpu_custom_call.1} parent=55 // pred_check
          %p528 = pneg %p163
        $region58: #{tpu_custom_call.1} parent=55 // pred_check_branch
          %530 = sbr.rel (%p528) target = $region60
        $region59: #{tpu_custom_call.1} parent=55 // pred_region
          %s531 = sand.u32 %s148, 1
          %s532 = scalar_lea.sflag [#allocation4], %s531
          %s533 = sand.u32 %s148, 1
          %s534 = smul.addr %s533, 8
          %s535 = scalar_lea.vmem [#allocation8], %s534
          %536 = dma.done %s532, 128
        $region60: #{tpu_custom_call.1} parent=55 // pred_fallthru
          _
      $region56: #{tpu_custom_call.1} parent=5 // pred_fallthru
        _
    $region6: #{tpu_custom_call.1} parent=1 // loop_footer
      %s21 = sadd.s32 1, %s17
    $region7: #{tpu_custom_call.1} parent=1 // loop_footer_branch
      %16 = sbr.rel target = $region3
    $region8: #{tpu_custom_call.1} parent=1 // loop_exit
      _
    %537 = vsyncpa [#allocation3], 1
    %s538 = scalar_lea.sflag [#allocation3], 1
    %539 = vsyncpa %s538, 1
    %540 = vsyncpa [#allocation6], 1
    %s541 = scalar_lea.sflag [#allocation6], 1
    %542 = vsyncpa %s541, 1
    %543 = vsyncpa [#allocation4], 1
    %s544 = scalar_lea.sflag [#allocation4], 1
    %545 = vsyncpa %s544, 1

</llo_original>
